<compile_context>
chip_gen: v6e
topology: v6e:2x2x1
jax: 0.10.0
libtpu: 0.0.40
codegen_flags: <defaults>
</compile_context>

<pallas_src>
import jax
import jax.numpy as jnp
from jax.experimental import pallas as pl
from jax.experimental.pallas import tpu as pltpu


def bert_en_voc_features(voc: jax.Array) -> jax.Array:
    """Equivalent of BertEnVocFeatures.forward: returns voc[:, 0, :]."""
    B, S, H = voc.shape

    # Free contiguous view: row b of voc_flat is [voc[b,0,:], voc[b,1,:], ...].
    # Lanes [0:H] of each row == voc[b, 0, :].
    voc_flat = voc.reshape(B, S * H)
    itemsize = jnp.dtype(voc.dtype).itemsize

    def _first_token_kernel(voc_hbm, out_hbm, sem):
        # Single strided HBM->HBM DMA of the seq-0 slab. No VMEM round-trip,
        # no vld/vst through vregs, no grid-step overhead.
        copy = pltpu.make_async_copy(voc_hbm.at[:, 0:H], out_hbm, sem)
        copy.start()
        copy.wait()

    return pl.pallas_call(
        _first_token_kernel,
        out_shape=jax.ShapeDtypeStruct((B, H), voc.dtype),
        # Both operands stay in HBM; the kernel drives the DMA itself.
        in_specs=[pl.BlockSpec(memory_space=pl.ANY)],
        out_specs=pl.BlockSpec(memory_space=pl.ANY),
        scratch_shapes=[pltpu.SemaphoreType.DMA(())],
        cost_estimate=pl.CostEstimate(
            flops=0,
            transcendentals=0,
            bytes_accessed=2 * B * H * itemsize,  # read slab + write output
        ),
    )(voc_flat)


if __name__ == "__main__":
    key = jax.random.PRNGKey(0)
    # Small, deterministic example consistent with the module's forward.
    batch, seq, hidden = 2, 8, 128
    voc = jax.random.normal(key, (batch, seq, hidden), dtype=jnp.float32)

    out = jax.block_until_ready(bert_en_voc_features(voc))

    # Reference check against plain JAX slicing (mirrors voc[:, 0, :]).
    ref = voc[:, 0, :]
    assert out.shape == (batch, hidden), out.shape
    assert jnp.allclose(out, ref), "Pallas output mismatch vs reference slice"

    print("KERNEL_OK")
</pallas_src>

<mosaic_0001>
module attributes {stable_mosaic.version = 11 : i64} {
  func.func @_first_token_kernel(%arg0: memref<2x1024xf32, #tpu.memory_space<any>>, %arg1: memref<2x128xf32, #tpu.memory_space<any>>, %arg2: memref<!tpu.dma_semaphore, #tpu.memory_space<semaphore_mem>>) attributes {dimension_semantics = [], scalar_prefetch = 0 : i64, scratch_operands = 1 : i64, tpu.core_type = #tpu.core_type<tc>} {
    %c0_i32 = arith.constant 0 : i32
    %c0_i32_0 = arith.constant 0 : i32
    %0 = tpu.memref_slice %arg0[%c0_i32, %c0_i32_0] : memref<2x1024xf32, #tpu.memory_space<any>> -> memref<2x128xf32, #tpu.memory_space<any>>
    tpu.enqueue_dma source(%0 : memref<2x128xf32, #tpu.memory_space<any>>) target(%arg1 : memref<2x128xf32, #tpu.memory_space<any>>) target_semaphore(%arg2 : memref<!tpu.dma_semaphore, #tpu.memory_space<semaphore_mem>>)
    %c0_i32_1 = arith.constant 0 : i32
    %c0_i32_2 = arith.constant 0 : i32
    %1 = tpu.memref_slice %arg0[%c0_i32_1, %c0_i32_2] : memref<2x1024xf32, #tpu.memory_space<any>> -> memref<2x128xf32, #tpu.memory_space<any>>
    tpu.wait_dma2 semaphore(%arg2 : memref<!tpu.dma_semaphore, #tpu.memory_space<semaphore_mem>>) src(%1 : memref<2x128xf32, #tpu.memory_space<any>>) dst(%arg1 : memref<2x128xf32, #tpu.memory_space<any>>)
    return
  }
}

</mosaic_0001>

<llo_original>
// kernel: tpu_custom_call.1
$region0: #{tpu_custom_call.1}
  #allocation0 [shape = 'u32[]', space=smem, size = 0x4, offset = 0x4, fixed_abs, tag = 'smem constant byte address 0x4 - core index']
  #allocation1 [shape = 'u32[144,128]{1,0:T(1,128)}', space=vmem, size = 0x12000, scoped, tag = 'internal scratch']
  #allocation2 [shape = 's32[1]{0}', space=sflag, size = 0x4, scoped, tag = 'scratch operand']
  #allocation3 [shape = 's32[]', space=sflag, size = 0x4, offset = 0, fixed_abs, tag = 'sflag constant byte address 0x0 - dummy sync flag']
  #allocation4 [shape = 'u32[0]{0}', space=smem, size = 0, offset = 0, fixed_abs, tag = 'smem constant byte address 0x0 - null']
  %s0 = inlined_call_operand.hbm [shape: f32[2,1024], index: 0, kind: input, shape index: {}]
  %s1 = inlined_call_operand.hbm [shape: f32[2,128], index: 1, kind: output, shape index: {}]
  %s2 = sld [smem:[#allocation0]]
  $region2: #{tpu_custom_call.1} parent=0
    _
  %s4 = ssub.s32 1, %s2
  %s5 = scalar_select 0, %s4, %s2
  %s7 = sshll.u32 1, 14
  %s8 = sxor.u32 4294967295, %s7
  %12 = dma.general %s0, 32, %s1, [#allocation2], 131072, [#allocation4], 0, 0
  %s13 = smul.u32 2, 1
  %s14 = smul.u32 %s13, 1
  %s15 = sshll.u32 %s14, 4
  %16 = dma.done [#allocation2], %s15
  %17 = vsyncmov [#allocation2]
  %s18 = vpop.sfrf %17
  %p19 = scmp.eq.s32.totalorder %s18, 0
  %p20 = pneg %p19
  %22 = shalt.err (%p20)

</llo_original>
